<compile_context>
chip_gen: v7x
topology: tpu7x:2x2x1
jax: 0.10.0
libtpu: 0.0.40
codegen_flags: <defaults>
</compile_context>

<pallas_src>
import math
import functools

import jax
import jax.numpy as jnp
from jax import lax
from jax.experimental import pallas as pl
from jax.experimental.pallas import tpu as pltpu

SUBLANE = 8
LANE = 128
MAX_BLOCK_ROWS = 1024  # 1024*128*4 B = 512 KiB per input buffer; 2 inputs x
                       # 2 pipeline buffers = 2 MiB, well inside the scoped
                       # VMEM budget on v5e/v6e/v7x and at the HBM roofline
                       # plateau, so no benefit going bigger.


def _wing_kernel(n_valid_ref, pred_ref, targ_ref, out_ref, *,
                 omega, epsilon, block_rows, needs_mask):
    p = pred_ref[...].astype(jnp.float32)
    t = targ_ref[...].astype(jnp.float32)
    delta = jnp.abs(t - p)

    # Piecewise wing loss:
    #   |d| <  omega : omega * log(1 + |d| / eps)
    #   |d| >= omega : |d| - C,  C = omega - omega*log(1 + omega/eps)
    c_const = omega - omega * math.log(1.0 + omega / epsilon)
    inv_eps = 1.0 / epsilon
    loss = jnp.where(delta < omega,
                     omega * jnp.log1p(delta * inv_eps),
                     delta - c_const)

    if needs_mask:
        # Mask out everything past the true element count.  Only required when
        # the last grid block is ragged (its VMEM tail holds garbage); the
        # select guarantees NaN/Inf garbage can never reach the sum.  This is
        # pure VPU work hidden under the DMA, so it is effectively free.
        start_row = pl.program_id(0) * block_rows
        row = lax.broadcasted_iota(jnp.int32, (block_rows, LANE), 0)
        lane = lax.broadcasted_iota(jnp.int32, (block_rows, LANE), 1)
        elem_idx = (start_row + row) * LANE + lane
        loss = jnp.where(elem_idx < n_valid_ref[0], loss, 0.0)

    # Reduce this block to a lane-dense (8, 128) partial sum.  The reshape
    # preserves the (8, 128) tiling (layout-free); the reduction is pure VPU
    # vreg adds hidden under the streaming DMA.
    out_ref[...] = loss.reshape(block_rows // SUBLANE, SUBLANE, LANE).sum(axis=0)


def wing_loss(pred, target, omega=10.0, epsilon=2.0,
              max_block_rows=MAX_BLOCK_ROWS):
    assert pred.shape == target.shape
    n_elems = pred.size
    if n_elems == 0:
        # Matches the 0/0 behaviour of the reference implementation.
        return jnp.float32(jnp.nan)

    # Keep the HBM dtype as-is; the kernel upcasts to f32 internally.
    p_flat = pred.reshape(-1)
    t_flat = target.reshape(-1)

    # Pad only up to the next (8, 128) tile -- and only when needed.  Zero
    # padding contributes zero loss by construction.
    tile_elems = SUBLANE * LANE
    pad = (-n_elems) % tile_elems
    if pad:
        p_flat = jnp.pad(p_flat, (0, pad))
        t_flat = jnp.pad(t_flat, (0, pad))
    n_rows = (n_elems + pad) // LANE          # multiple of 8 by construction

    block_rows = min(max_block_rows, n_rows)  # multiple of 8
    n_blocks = pl.cdiv(n_rows, block_rows)
    # Mask only needed if the last grid block is ragged (garbage VMEM tail).
    needs_mask = (n_rows % block_rows) != 0

    p2 = p_flat.reshape(n_rows, LANE)
    t2 = t_flat.reshape(n_rows, LANE)
    n_valid = jnp.array([n_elems], dtype=jnp.int32)

    kernel = functools.partial(_wing_kernel, omega=float(omega),
                               epsilon=float(epsilon), block_rows=block_rows,
                               needs_mask=needs_mask)

    partials = pl.pallas_call(
        kernel,
        out_shape=jax.ShapeDtypeStruct((n_blocks * SUBLANE, LANE), jnp.float32),
        grid_spec=pltpu.PrefetchScalarGridSpec(
            num_scalar_prefetch=1,
            grid=(n_blocks,),
            in_specs=[
                pl.BlockSpec((block_rows, LANE), lambda i, n: (i, 0)),
                pl.BlockSpec((block_rows, LANE), lambda i, n: (i, 0)),
            ],
            out_specs=pl.BlockSpec((SUBLANE, LANE), lambda i, n: (i, 0)),
        ),
        compiler_params=pltpu.CompilerParams(
            dimension_semantics=("parallel",)),
    )(n_valid, p2, t2)

    # Final tiny cross-lane reduce + mean done in the wrapper (lane-dense
    # kernel output; no masked scalar store on the critical last step).
    return jnp.sum(partials) / jnp.float32(n_elems)


def _reference(pred, target, omega=10.0, epsilon=2.0):
    delta = jnp.abs(target.astype(jnp.float32) - pred.astype(jnp.float32))
    c_const = omega - omega * math.log(1.0 + omega / epsilon)
    loss = jnp.where(delta < omega,
                     omega * jnp.log1p(delta / epsilon),
                     delta - c_const)
    return jnp.mean(loss)


if __name__ == "__main__":
    key = jax.random.PRNGKey(0)
    k1, k2 = jax.random.split(key)
    # Small shape consistent with a landmark-regression style input.
    shape = (2, 4, 16, 16)
    pred = jax.random.normal(k1, shape, dtype=jnp.float32)
    # Scale target so both |delta| < omega and |delta| >= omega branches occur.
    target = 20.0 * jax.random.normal(k2, shape, dtype=jnp.float32)

    out = jax.block_until_ready(wing_loss(pred, target, omega=10.0, epsilon=2.0))
    ref = jax.block_until_ready(_reference(pred, target, omega=10.0, epsilon=2.0))
    assert jnp.allclose(out, ref, rtol=1e-5, atol=1e-5), (out, ref)

    print("KERNEL_OK")
</pallas_src>

<mosaic_0001>
module attributes {stable_mosaic.version = 11 : i64} {
  func.func @_wing_kernel(%arg0: i32, %arg1: memref<1xi32, #tpu.memory_space<smem>>, %arg2: memref<16x128xf32, #tpu.memory_space<vmem>>, %arg3: memref<16x128xf32, #tpu.memory_space<vmem>>, %arg4: memref<8x128xf32, #tpu.memory_space<vmem>>) attributes {dimension_semantics = [#tpu.dimension_semantics<parallel>], iteration_bounds = array<i64: 1>, scalar_prefetch = 1 : i64, scratch_operands = 0 : i64, tpu.core_type = #tpu.core_type<tc>, window_params = [{transform_indices = @transform_0, window_bounds = array<i64: 16, 128>}, {transform_indices = @transform_1, window_bounds = array<i64: 16, 128>}, {transform_indices = @transform_2, window_bounds = array<i64: 8, 128>}]} {
    %c0 = arith.constant 0 : index
    %c0_0 = arith.constant 0 : index
    %0 = vector.load %arg2[%c0, %c0_0] : memref<16x128xf32, #tpu.memory_space<vmem>>, vector<16x128xf32>
    %c0_1 = arith.constant 0 : index
    %c0_2 = arith.constant 0 : index
    %1 = vector.load %arg3[%c0_1, %c0_2] : memref<16x128xf32, #tpu.memory_space<vmem>>, vector<16x128xf32>
    %2 = arith.subf %1, %0 : vector<16x128xf32>
    %3 = math.absf %2 : vector<16x128xf32>
    %cst = arith.constant 1.000000e+01 : f32
    %4 = vector.broadcast %cst : f32 to vector<16x128xf32>
    %5 = arith.cmpf olt, %3, %4 : vector<16x128xf32>
    %cst_3 = arith.constant 5.000000e-01 : f32
    %6 = vector.broadcast %cst_3 : f32 to vector<16x128xf32>
    %7 = arith.mulf %3, %6 : vector<16x128xf32>
    %8 = math.log1p %7 : vector<16x128xf32>
    %cst_4 = arith.constant 1.000000e+01 : f32
    %9 = vector.broadcast %cst_4 : f32 to vector<16x128xf32>
    %10 = arith.mulf %9, %8 : vector<16x128xf32>
    %cst_5 = arith.constant -7.9175949 : f32
    %11 = vector.broadcast %cst_5 : f32 to vector<16x128xf32>
    %12 = arith.subf %3, %11 : vector<16x128xf32>
    %13 = arith.select %5, %10, %12 : vector<16x128xi1>, vector<16x128xf32>
    %14 = vector.shape_cast %13 : vector<16x128xf32> to vector<2x8x128xf32>
    %cst_6 = arith.constant dense<0.000000e+00> : vector<8x128xf32>
    %15 = vector.multi_reduction <add>, %14, %cst_6 [0] : vector<2x8x128xf32> to vector<8x128xf32>
    %c0_7 = arith.constant 0 : index
    %c0_8 = arith.constant 0 : index
    %16 = vector.load %arg4[%c0_7, %c0_8] : memref<8x128xf32, #tpu.memory_space<vmem>>, vector<8x128xf32>
    tpu.vector_store %arg4[%c0_7, %c0_8], %15 {strides = array<i32>} : memref<8x128xf32, #tpu.memory_space<vmem>>, vector<8x128xf32>,
    return
  }
  func.func @transform_0(%arg0: i32, %arg1: memref<1xi32, #tpu.memory_space<smem>>) -> (i32, i32) {
    %c0_i32 = arith.constant 0 : i32
    %c0_i32_0 = arith.constant 0 : i32
    return %arg0, %c0_i32 : i32, i32
  }
  func.func @transform_1(%arg0: i32, %arg1: memref<1xi32, #tpu.memory_space<smem>>) -> (i32, i32) {
    %c0_i32 = arith.constant 0 : i32
    %c0_i32_0 = arith.constant 0 : i32
    return %arg0, %c0_i32 : i32, i32
  }
  func.func @transform_2(%arg0: i32, %arg1: memref<1xi32, #tpu.memory_space<smem>>) -> (i32, i32) {
    %c0_i32 = arith.constant 0 : i32
    %c0_i32_0 = arith.constant 0 : i32
    return %arg0, %c0_i32 : i32, i32
  }
}

</mosaic_0001>

<llo_original>
// kernel: tpu_custom_call.1
$region0: #{tpu_custom_call.1}
  #allocation0 [shape = 'u32[]', space=smem, size = 0x4, offset = 0x4, fixed_abs, tag = 'smem constant byte address 0x4 - core index']
  #allocation1 [shape = 'u32[144,128]{1,0:T(1,128)}', space=vmem, size = 0x12000, scoped, tag = 'internal scratch']
  #allocation2 [shape = 's32[1]{0}', space=sflag, size = 0x4, scoped, tag = 'scoped memory for tpu_custom_call.1']
  #allocation3 [shape = 's32[1]{0:T(128)S(6)}', space=smem, size = 0x200, scoped, tag = 'prefetched SMEM operand 0']
  %s0 = inlined_call_operand.<no memory space> [shape: s32[1], index: 0, kind: input, shape index: {}]
  %s1 = inlined_call_operand.hbm [shape: f32[16,128], index: 1, kind: input, shape index: {}]
  %s2 = inlined_call_operand.hbm [shape: f32[16,128], index: 2, kind: input, shape index: {}]
  %s3 = inlined_call_operand.hbm [shape: f32[8,128], index: 3, kind: output, shape index: {}]
  %s4 = sld [smem:[#allocation0]]
  $region26: #{tpu_custom_call.1} parent=0
    _
  %s6 = ssub.s32 1, %s4
  %s7 = scalar_select 0, %s6, %s4
  %8 = sst [smem:[#allocation3]] %s0
  $region1: #{tpu_custom_call.1} parent=0
    #allocation4 [shape = 'u8[8192]{0}', space=vmem, size = 0x2000, scoped, tag = 'input window, operand 1, single buffered']
    #allocation5 [shape = 's32[1]{0}', space=sflag, size = 0x4, scoped, tag = 'scoped memory for tpu_custom_call.1']
    #allocation6 [shape = 's32[1]{0}', space=sflag, size = 0x4, scoped, tag = 'scoped memory for tpu_custom_call.1']
    #allocation7 [shape = 'u8[8192]{0}', space=vmem, size = 0x2000, scoped, tag = 'input window, operand 2, single buffered']
    #allocation8 [shape = 's32[1]{0}', space=sflag, size = 0x4, scoped, tag = 'scoped memory for tpu_custom_call.1']
    #allocation9 [shape = 'u8[4096]{0}', space=vmem, size = 0x1000, scoped, tag = 'output window, operand 0, single buffered']
    %9 = vsyncpa [#allocation5], 0
    %10 = vsyncpa [#allocation8], 0
    %11 = vsyncpa [#allocation6], 0
    // Predicated region
    $region2: #{tpu_custom_call.1} parent=1 // pred_check
      _
    $region3: #{tpu_custom_call.1} parent=1 // pred_check_branch
      %13 = sbr.rel (0) target = $region5
    $region4: #{tpu_custom_call.1} parent=1 // pred_region
      %s15 = ssub.s32 256, 256
      %16 = vsyncadd [#allocation5], %s15
      %s17 = sshll.u32 [#allocation4], 4
      %s18 = int_to_ptr.vmem [resolvable:$true] %s17
      %23 = dma.hbm_to_vmem [thread:$0]  %s1, 256, %s18, [#allocation5], 128, 128, 8
    $region5: #{tpu_custom_call.1} parent=1 // pred_fallthru
      _
    // Predicated region
    $region6: #{tpu_custom_call.1} parent=1 // pred_check
      _
    $region7: #{tpu_custom_call.1} parent=1 // pred_check_branch
      %25 = sbr.rel (0) target = $region9
    $region8: #{tpu_custom_call.1} parent=1 // pred_region
      %s27 = ssub.s32 256, 256
      %28 = vsyncadd [#allocation8], %s27
      %s29 = sshll.u32 [#allocation7], 4
      %s30 = int_to_ptr.vmem [resolvable:$true] %s29
      %35 = dma.hbm_to_vmem [thread:$0]  %s2, 256, %s30, [#allocation8], 128, 128, 8
    $region9: #{tpu_custom_call.1} parent=1 // pred_fallthru
      _
    // Predicated region
    $region10: #{tpu_custom_call.1} parent=1 // pred_check
      _
    $region11: #{tpu_custom_call.1} parent=1 // pred_check_branch
      %37 = sbr.rel (0) target = $region13
    $region12: #{tpu_custom_call.1} parent=1 // pred_region
      %38 = dma.done [#allocation5], 256
    $region13: #{tpu_custom_call.1} parent=1 // pred_fallthru
      _
    // Predicated region
    $region14: #{tpu_custom_call.1} parent=1 // pred_check
      _
    $region15: #{tpu_custom_call.1} parent=1 // pred_check_branch
      %40 = sbr.rel (0) target = $region17
    $region16: #{tpu_custom_call.1} parent=1 // pred_region
      %41 = dma.done [#allocation8], 256
    $region17: #{tpu_custom_call.1} parent=1 // pred_fallthru
      _
    %v42 = vld [vmem:[#allocation4] sm:$0xff]
    %v43 = vld [vmem:[#allocation4 + $0x8] sm:$0xff]
    %v44 = vld [vmem:[#allocation7] sm:$0xff]
    %v45 = vld [vmem:[#allocation7 + $0x8] sm:$0xff]
    %v46 = vsub.f32 %v44, %v42
    %v47 = vsub.f32 %v45, %v43
    %v48 = vand.u32 2147483647, %v46
    %v49 = vand.u32 2147483647, %v47
    %vm50 = vcmp.lt.f32.partialorder %v48, 10.0
    %vm51 = vcmp.lt.f32.partialorder %v49, 10.0
    %v52 = vmul.f32 %v48, 0.5
    %v53 = vmul.f32 %v49, 0.5
    %v54 = vadd.f32 %v52, 1.0
    %v55 = vlog2.pop %v54
    %v56 = vmul.f32 %v55, 0.6931472
    %v57 = vmul.f32 -0.5, %v52
    %v58 = vadd.f32 %v57, 1.0
    %v59 = vmul.f32 %v58, %v52
    %v60 = vand.u32 2147483647, %v52
    %vm61 = vcmp.lt.f32.partialorder %v60, 0.0004427343
    %v62 = vsel %vm61, %v59, %v56
    %v63 = vadd.f32 %v53, 1.0
    %v64 = vlog2.pop %v63
    %v65 = vmul.f32 %v64, 0.6931472
    %v66 = vmul.f32 -0.5, %v53
    %v67 = vadd.f32 %v66, 1.0
    %v68 = vmul.f32 %v67, %v53
    %v69 = vand.u32 2147483647, %v53
    %vm70 = vcmp.lt.f32.partialorder %v69, 0.0004427343
    %v71 = vsel %vm70, %v68, %v65
    %v72 = vmul.f32 %v62, 10.0
    %v73 = vmul.f32 %v71, 10.0
    %v74 = vsub.f32 %v48, -7.917595
    %v75 = vsub.f32 %v49, -7.917595
    %v76 = vsel %vm50, %v72, %v74
    %v77 = vsel %vm51, %v73, %v75
    %v78 = vadd.f32 %v76, %v77
    %79 = vst [vmem:[#allocation9] sm:$0xff] %v78
    // Predicated region
    $region18: #{tpu_custom_call.1} parent=1 // pred_check
      _
    $region19: #{tpu_custom_call.1} parent=1 // pred_check_branch
      %81 = sbr.rel (0) target = $region21
    $region20: #{tpu_custom_call.1} parent=1 // pred_region
      %s83 = ssub.s32 128, 128
      %84 = vsyncadd [#allocation6], %s83
      %s86 = sshll.u32 [#allocation9], 4
      %s87 = int_to_ptr.vmem [resolvable:$true] %s86
      %89 = dma.vmem_to_hbm [thread:$0]  %s87, 128, %s3, [#allocation6]
    $region21: #{tpu_custom_call.1} parent=1 // pred_fallthru
      _
    // Predicated region
    $region22: #{tpu_custom_call.1} parent=1 // pred_check
      _
    $region23: #{tpu_custom_call.1} parent=1 // pred_check_branch
      %91 = sbr.rel (0) target = $region25
    $region24: #{tpu_custom_call.1} parent=1 // pred_region
      %92 = dma.done [#allocation6], 128
    $region25: #{tpu_custom_call.1} parent=1 // pred_fallthru
      _
    %93 = vsyncpa [#allocation5], 1
    %94 = vsyncpa [#allocation8], 1
    %95 = vsyncpa [#allocation6], 1

</llo_original>
